<compile_context>
chip_gen: v6e
topology: v6e:2x2x1
jax: 0.10.0
libtpu: 0.0.40
codegen_flags: <defaults>
</compile_context>

<pallas_src>
import jax
import jax.numpy as jnp
import numpy as np
from jax.experimental import pallas as pl
from jax.experimental.pallas import tpu as pltpu

LN_EPS = 1e-5
POS_LEN = 100          # positional_encoding covers 100 flattened rows (module hard limit)


def _round_up(x, m):
    return (x + m - 1) // m * m


def _layer_norm(y, gamma, beta):
    mu = jnp.mean(y, axis=-1, keepdims=True)
    var = jnp.mean((y - mu) ** 2, axis=-1, keepdims=True)
    return (y - mu) * jax.lax.rsqrt(var + LN_EPS) * gamma + beta


# --------------------------------------------------------------------------------------
# Kernel: grid = (row_tiles, num_layers).  Activations live in a persistent VMEM scratch.
# --------------------------------------------------------------------------------------
def transformer_kernel(
    x_ref,       # (RB, input_dim)   f32   row tile of flattened input
    t_ref,       # (RB, index_dim)   f32   row tile of flattened t
    pos_ref,     # (RB, H)           f32   positional rows + embedding bias (pre-added)
    wx_ref,      # (input_dim, H)    bf16  embedding weight, x columns (transposed)
    wt_ref,      # (index_dim, H)    f32   embedding weight, t columns (transposed)
    w_attn_ref,  # (1, H, H)         bf16  fused attention weight  Wv^T @ Wo^T  (layer l)
    w1_ref,      # (1, H, F)         bf16  FFN linear1 (transposed)
    w2_ref,      # (1, F, H)         bf16  FFN linear2 (transposed)
    vec_ref,     # (1, 6, H)         f32   rows: [b_attn, b2, ln1_g, ln1_b, ln2_g, ln2_b]
    b1_ref,      # (1, 1, F)         f32   FFN linear1 bias
    w_out_ref,   # (H, OUTP)         bf16  output layer (transposed, lane-padded to 128)
    b_out_ref,   # (1, OUTP)         f32
    o_ref,       # (RB, OUTP)        f32
    h_scr,       # (RB, H)           f32   persistent activation across the layer axis
):
    l = pl.program_id(1)
    mm_dtype = w_attn_ref.dtype

    # ---- input embedding (only on the first layer step of each row tile) ----
    @pl.when(l == 0)
    def _embed():
        emb = jnp.dot(x_ref[...].astype(mm_dtype), wx_ref[...],
                      preferred_element_type=jnp.float32)
        t_f = t_ref[...].astype(jnp.float32)
        wt = wt_ref[...].astype(jnp.float32)
        for j in range(t_ref.shape[1]):          # index_dim is tiny & static -> broadcast MACs
            emb = emb + t_f[:, j:j + 1] * wt[j:j + 1, :]
        h_scr[...] = emb + pos_ref[...]          # pos slab already contains the embedding bias

    vec = vec_ref[0]                             # (6, H)
    b_attn, b2 = vec[0:1], vec[1:2]
    g1, be1 = vec[2:3], vec[3:4]
    g2, be2 = vec[4:5], vec[5:6]

    h = h_scr[...]                               # f32

    # ---- self-attention block: seq len == 1 -> softmax == 1 -> out_proj(V(h)), fused GEMM ----
    attn = jnp.dot(h.astype(mm_dtype), w_attn_ref[0],
                   preferred_element_type=jnp.float32) + b_attn
    h = _layer_norm(h + attn, g1, be1)

    # ---- feed-forward block ----
    ff = jnp.maximum(
        jnp.dot(h.astype(mm_dtype), w1_ref[0], preferred_element_type=jnp.float32)
        + b1_ref[0], 0.0)
    ff = jnp.dot(ff.astype(mm_dtype), w2_ref[0], preferred_element_type=jnp.float32) + b2
    h = _layer_norm(h + ff, g2, be2)
    h_scr[...] = h

    # ---- output projection (only on the last layer step) ----
    @pl.when(l == pl.num_programs(1) - 1)
    def _project_out():
        out = jnp.dot(h.astype(mm_dtype), w_out_ref[...],
                      preferred_element_type=jnp.float32) + b_out_ref[...]
        o_ref[...] = out.astype(o_ref.dtype)


# --------------------------------------------------------------------------------------
# One-time parameter preparation (hoisted OUT of the per-call path).
# --------------------------------------------------------------------------------------
def prepare_params(params, *, matmul_dtype=jnp.bfloat16):
    """Fuse / transpose / stack / pad / cast the raw (PyTorch-layout) parameters once.

    Call once per parameter set and reuse the result for every forward call.
    The Wv^T @ Wo^T fusion is valid because the encoder's effective sequence length is 1.
    """
    hidden, d_cat = params["w_emb"].shape
    input_dim = params["w_out"].shape[0]
    index_dim = d_cat - input_dim
    out_pad = _round_up(input_dim, 128)          # lane-dense output store

    w_emb_t = params["w_emb"].T                                          # (d_cat, H)
    wx = w_emb_t[:input_dim].astype(matmul_dtype)                        # (input_dim, H)
    wt = w_emb_t[input_dim:].astype(jnp.float32)                         # (index_dim, H)

    # positional slab padded to 128 rows (covers any 8/16-aligned n_pad <= 112) + emb bias folded in
    pos = jnp.pad(params["pos"][0], ((0, 128 - POS_LEN), (0, 0))) + params["b_emb"][None, :]

    def stack(f):
        return jnp.stack([f(lp) for lp in params["layers"]])

    # attention fusion: out_proj(V(h)) = h @ (Wv^T Wo^T) + (bv Wo^T + bo)   [seq len == 1]
    w_attn = stack(lambda lp: lp["in_proj_w"][2 * hidden:].T @ lp["out_proj_w"].T)
    b_attn = stack(lambda lp: lp["in_proj_b"][2 * hidden:] @ lp["out_proj_w"].T + lp["out_proj_b"])
    w1 = stack(lambda lp: lp["w1"].T).astype(matmul_dtype)               # (L, H, F)
    w2 = stack(lambda lp: lp["w2"].T).astype(matmul_dtype)               # (L, F, H)
    b1 = stack(lambda lp: lp["b1"])[:, None, :].astype(jnp.float32)      # (L, 1, F)
    vec = jnp.stack(
        [jnp.stack([b_attn[l], lp["b2"], lp["g1"], lp["be1"], lp["g2"], lp["be2"]])
         for l, lp in enumerate(params["layers"])]
    ).astype(jnp.float32)                                                # (L, 6, H)

    w_out = jnp.pad(params["w_out"].T, ((0, 0), (0, out_pad - input_dim))).astype(matmul_dtype)
    b_out = jnp.pad(params["b_out"], (0, out_pad - input_dim))[None, :].astype(jnp.float32)

    return {
        "wx": wx, "wt": wt, "pos": pos,
        "w_attn": w_attn.astype(matmul_dtype), "w1": w1, "w2": w2,
        "vec": vec, "b1": b1, "w_out": w_out, "b_out": b_out,
    }


# --------------------------------------------------------------------------------------
# Per-call forward: only x/t-dependent work + the pallas_call.
# --------------------------------------------------------------------------------------
@jax.jit
def transformer_forward(x, t, prepped):
    input_dim = prepped["wx"].shape[0]
    index_dim = prepped["wt"].shape[0]
    hidden = prepped["wx"].shape[1]
    ffn = prepped["w1"].shape[2]
    num_layers = prepped["w_attn"].shape[0]
    out_pad = prepped["w_out"].shape[1]

    sz = x.shape
    x2d = x.reshape(-1, input_dim).astype(jnp.float32)
    t2d = t.reshape(-1, index_dim).astype(jnp.float32)
    n = x2d.shape[0]
    if n > POS_LEN:
        # same hard limit as the PyTorch module (positional_encoding covers 100 rows)
        raise ValueError(f"flattened row count {n} exceeds positional-encoding length {POS_LEN}")

    # >=2 row tiles lets v7x split rows across its two TensorCores; single tile for tiny inputs.
    num_row_tiles = 2 if n >= 16 else 1
    n_pad = _round_up(n, 8 * num_row_tiles)
    rb = n_pad // num_row_tiles
    if n_pad != n:
        x2d = jnp.pad(x2d, ((0, n_pad - n), (0, 0)))
        t2d = jnp.pad(t2d, ((0, n_pad - n), (0, 0)))
    pos = prepped["pos"][:n_pad]                                         # static slice

    # advisory cost hint (tiny kernel; keeps XLA from mis-scheduling it)
    flops = 2 * n_pad * ((input_dim + index_dim) * hidden
                         + num_layers * (hidden * hidden + 2 * hidden * ffn)
                         + hidden * out_pad)
    operands = (x2d, t2d, pos, prepped["wx"], prepped["wt"], prepped["w_attn"],
                prepped["w1"], prepped["w2"], prepped["vec"], prepped["b1"],
                prepped["w_out"], prepped["b_out"])
    bytes_accessed = sum(int(a.size) * a.dtype.itemsize for a in operands) + 4 * n_pad * out_pad
    cost = pl.CostEstimate(flops=flops, transcendentals=2 * num_layers * n_pad,
                           bytes_accessed=int(bytes_accessed))

    grid_spec = pltpu.PrefetchScalarGridSpec(
        num_scalar_prefetch=0,
        grid=(num_row_tiles, num_layers),
        in_specs=[
            pl.BlockSpec((rb, input_dim), lambda i, l: (i, 0)),          # x rows
            pl.BlockSpec((rb, index_dim), lambda i, l: (i, 0)),          # t rows
            pl.BlockSpec((rb, hidden), lambda i, l: (i, 0)),             # pos (+ emb bias)
            pl.BlockSpec((input_dim, hidden), lambda i, l: (0, 0)),      # Wx (resident)
            pl.BlockSpec((index_dim, hidden), lambda i, l: (0, 0)),      # Wt (resident)
            pl.BlockSpec((1, hidden, hidden), lambda i, l: (l, 0, 0)),   # fused attn W (streamed)
            pl.BlockSpec((1, hidden, ffn), lambda i, l: (l, 0, 0)),      # W1 (streamed)
            pl.BlockSpec((1, ffn, hidden), lambda i, l: (l, 0, 0)),      # W2 (streamed)
            pl.BlockSpec((1, 6, hidden), lambda i, l: (l, 0, 0)),        # packed per-layer vectors
            pl.BlockSpec((1, 1, ffn), lambda i, l: (l, 0, 0)),           # b1
            pl.BlockSpec((hidden, out_pad), lambda i, l: (0, 0)),        # W_out (resident)
            pl.BlockSpec((1, out_pad), lambda i, l: (0, 0)),             # b_out (resident)
        ],
        out_specs=pl.BlockSpec((rb, out_pad), lambda i, l: (i, 0)),
        scratch_shapes=[pltpu.VMEM((rb, hidden), jnp.float32)],          # persistent h
    )

    out2d = pl.pallas_call(
        transformer_kernel,
        out_shape=jax.ShapeDtypeStruct((n_pad, out_pad), jnp.float32),
        grid_spec=grid_spec,
        compiler_params=pltpu.CompilerParams(
            dimension_semantics=("parallel", "arbitrary"),
            vmem_limit_bytes=32 * 1024 * 1024,
        ),
        cost_estimate=cost,
    )(*operands)

    return out2d[:n, :input_dim].reshape(sz)


# --------------------------------------------------------------------------------------
# Raw (PyTorch-layout) parameters + pure-JAX f32 reference of the module forward.
# --------------------------------------------------------------------------------------
def init_params(key, *, input_dim, index_dim, hidden, ffn, num_layers):
    ks = iter(jax.random.split(key, 8 + 8 * num_layers))
    nrm = lambda shape, s=0.05: s * jax.random.normal(next(ks), shape, jnp.float32)
    params = {
        "w_emb": nrm((hidden, input_dim + index_dim)),
        "b_emb": nrm((hidden,)),
        "pos": jax.random.normal(next(ks), (1, POS_LEN, hidden), jnp.float32),
        "w_out": nrm((input_dim, hidden)),
        "b_out": nrm((input_dim,)),
        "layers": [],
    }
    for _ in range(num_layers):
        params["layers"].append({
            "in_proj_w": nrm((3 * hidden, hidden)),
            "in_proj_b": nrm((3 * hidden,)),
            "out_proj_w": nrm((hidden, hidden)),
            "out_proj_b": nrm((hidden,)),
            "w1": nrm((ffn, hidden)),
            "b1": nrm((ffn,)),
            "w2": nrm((hidden, ffn)),
            "b2": nrm((hidden,)),
            "g1": jnp.ones((hidden,), jnp.float32),
            "be1": jnp.zeros((hidden,), jnp.float32),
            "g2": jnp.ones((hidden,), jnp.float32),
            "be2": jnp.zeros((hidden,), jnp.float32),
        })
    return params


def reference_forward(x, t, params, *, input_dim, index_dim):
    """Pure-JAX f32 reference of the PyTorch forward (eval mode), unfused weights."""
    sz = x.shape
    xi = x.reshape(-1, input_dim).astype(jnp.float32)
    ti = t.reshape(-1, index_dim).astype(jnp.float32)
    h = jnp.concatenate([xi, ti], axis=1)
    n = h.shape[0]
    hidden = params["w_emb"].shape[0]
    h = h @ params["w_emb"].T + params["b_emb"] + params["pos"][0, :n, :]
    for lp in params["layers"]:
        wv = lp["in_proj_w"][2 * hidden:]
        bv = lp["in_proj_b"][2 * hidden:]
        attn = (h @ wv.T + bv) @ lp["out_proj_w"].T + lp["out_proj_b"]
        h = _layer_norm(h + attn, lp["g1"], lp["be1"])
        ff = jax.nn.relu(h @ lp["w1"].T + lp["b1"]) @ lp["w2"].T + lp["b2"]
        h = _layer_norm(h + ff, lp["g2"], lp["be2"])
    out = h @ params["w_out"].T + params["b_out"]
    return out.reshape(sz)


if __name__ == "__main__":
    # Small shapes consistent with the module's forward:
    #   input: (batch=2, seq=8, input_dim=16) -> flattened rows N = 16
    #   t:     (batch=2, seq=8, index_dim=1)
    INPUT_DIM, INDEX_DIM, HIDDEN, FFN, NUM_LAYERS = 16, 1, 32, 64, 2

    key = jax.random.PRNGKey(0)
    k_x, k_t, k_p = jax.random.split(key, 3)
    x = jax.random.normal(k_x, (2, 8, INPUT_DIM), jnp.float32)
    t = jax.random.uniform(k_t, (2, 8, INDEX_DIM), jnp.float32)
    params = init_params(k_p, input_dim=INPUT_DIM, index_dim=INDEX_DIM,
                         hidden=HIDDEN, ffn=FFN, num_layers=NUM_LAYERS)

    # One-time parameter preparation (fusion / transposes / packing / bf16 casts), reused per call.
    prepped = prepare_params(params, matmul_dtype=jnp.bfloat16)
    prepped = jax.tree_util.tree_map(jax.block_until_ready, prepped)

    out = transformer_forward(x, t, prepped)
    out = jax.block_until_ready(out)

    ref = reference_forward(x, t, params, input_dim=INPUT_DIM, index_dIM=INDEX_DIM) if False else \
        reference_forward(x, t, params, input_dim=INPUT_DIM, index_dim=INDEX_DIM)
    # bf16 matmul operands (f32 accumulation) vs. the f32 reference -> loosened tolerance.
    np.testing.assert_allclose(np.asarray(out), np.asarray(ref), rtol=5e-2, atol=2e-2)
    assert out.shape == x.shape and out.dtype == jnp.float32

    print("KERNEL_OK")
</pallas_src>

<mosaic_0001>
module attributes {stable_mosaic.version = 11 : i64} {
  func.func @transformer_kernel(%arg0: i32, %arg1: i32, %arg2: memref<8x16xf32, #tpu.memory_space<vmem>>, %arg3: memref<8x1xf32, #tpu.memory_space<vmem>>, %arg4: memref<8x32xf32, #tpu.memory_space<vmem>>, %arg5: memref<16x32xbf16, #tpu.memory_space<vmem>>, %arg6: memref<1x32xf32, #tpu.memory_space<vmem>>, %arg7: memref<1x32x32xbf16, #tpu.memory_space<vmem>>, %arg8: memref<1x32x64xbf16, #tpu.memory_space<vmem>>, %arg9: memref<1x64x32xbf16, #tpu.memory_space<vmem>>, %arg10: memref<1x6x32xf32, #tpu.memory_space<vmem>>, %arg11: memref<1x1x64xf32, #tpu.memory_space<vmem>>, %arg12: memref<32x128xbf16, #tpu.memory_space<vmem>>, %arg13: memref<1x128xf32, #tpu.memory_space<vmem>>, %arg14: memref<8x128xf32, #tpu.memory_space<vmem>>, %arg15: memref<8x32xf32, #tpu.memory_space<vmem>>) attributes {dimension_semantics = [#tpu.dimension_semantics<parallel>, #tpu.dimension_semantics<arbitrary>], iteration_bounds = array<i64: 2, 2>, scalar_prefetch = 0 : i64, scratch_operands = 1 : i64, tpu.core_type = #tpu.core_type<tc>, window_params = [{transform_indices = @transform_0, window_bounds = array<i64: 8, 16>}, {transform_indices = @transform_1, window_bounds = array<i64: 8, 1>}, {transform_indices = @transform_2, window_bounds = array<i64: 8, 32>}, {pipeline_mode = #tpu.pipeline_mode<synchronous>, transform_indices = @transform_3, window_bounds = array<i64: 16, 32>}, {pipeline_mode = #tpu.pipeline_mode<synchronous>, transform_indices = @transform_4, window_bounds = array<i64: 1, 32>}, {transform_indices = @transform_5, window_bounds = array<i64: 1, 32, 32>}, {transform_indices = @transform_6, window_bounds = array<i64: 1, 32, 64>}, {transform_indices = @transform_7, window_bounds = array<i64: 1, 64, 32>}, {transform_indices = @transform_8, window_bounds = array<i64: 1, 6, 32>}, {transform_indices = @transform_9, window_bounds = array<i64: 1, 1, 64>}, {pipeline_mode = #tpu.pipeline_mode<synchronous>, transform_indices = @transform_10, window_bounds = array<i64: 32, 128>}, {pipeline_mode = #tpu.pipeline_mode<synchronous>, transform_indices = @transform_11, window_bounds = array<i64: 1, 128>}, {transform_indices = @transform_12, window_bounds = array<i64: 8, 128>}]} {
    %c0_i32 = arith.constant 0 : i32
    %0 = arith.cmpi eq, %arg1, %c0_i32 : i32
    %1 = arith.extui %0 : i1 to i32
    %c0_i32_0 = arith.constant 0 : i32
    %2 = arith.cmpi ne, %1, %c0_i32_0 : i32
    scf.if %2 {
      %c0_33 = arith.constant 0 : index
      %c0_34 = arith.constant 0 : index
      %84 = vector.load %arg2[%c0_33, %c0_34] : memref<8x16xf32, #tpu.memory_space<vmem>>, vector<8x16xf32>
      %85 = arith.truncf %84 : vector<8x16xf32> to vector<8x16xbf16>
      %c0_35 = arith.constant 0 : index
      %c0_36 = arith.constant 0 : index
      %86 = vector.load %arg5[%c0_35, %c0_36] : memref<16x32xbf16, #tpu.memory_space<vmem>>, vector<16x32xbf16>
      %cst_37 = arith.constant dense<0.000000e+00> : vector<8x32xf32>
      %87 = tpu.matmul %85, %86, %cst_37 {dimension_numbers = #tpu.dot_dimension_numbers<[1], [0], [0], [1], [0, 0, 1, 1], [], []>} : vector<8x16xbf16>, vector<16x32xbf16>, vector<8x32xf32> -> vector<8x32xf32>
      %c0_38 = arith.constant 0 : index
      %c0_39 = arith.constant 0 : index
      %88 = vector.load %arg3[%c0_38, %c0_39] : memref<8x1xf32, #tpu.memory_space<vmem>>, vector<8x1xf32>
      %c0_40 = arith.constant 0 : index
      %c0_41 = arith.constant 0 : index
      %89 = vector.load %arg6[%c0_40, %c0_41] : memref<1x32xf32, #tpu.memory_space<vmem>>, vector<1x32xf32>
      %90 = vector.broadcast %88 : vector<8x1xf32> to vector<8x32xf32>
      %91 = vector.broadcast %89 : vector<1x32xf32> to vector<8x32xf32>
      %92 = arith.mulf %90, %91 : vector<8x32xf32>
      %93 = arith.addf %87, %92 : vector<8x32xf32>
      %c0_42 = arith.constant 0 : index
      %c0_43 = arith.constant 0 : index
      %94 = vector.load %arg4[%c0_42, %c0_43] : memref<8x32xf32, #tpu.memory_space<vmem>>, vector<8x32xf32>
      %95 = arith.addf %93, %94 : vector<8x32xf32>
      %c0_44 = arith.constant 0 : index
      %c0_45 = arith.constant 0 : index
      %96 = vector.load %arg15[%c0_44, %c0_45] : memref<8x32xf32, #tpu.memory_space<vmem>>, vector<8x32xf32>
      tpu.vector_store %arg15[%c0_44, %c0_45], %95 {strides = array<i32>} : memref<8x32xf32, #tpu.memory_space<vmem>>, vector<8x32xf32>,
    } else {
    }
    %c0 = arith.constant 0 : index
    %c0_1 = arith.constant 0 : index
    %c0_2 = arith.constant 0 : index
    %3 = vector.load %arg10[%c0, %c0_1, %c0_2] : memref<1x6x32xf32, #tpu.memory_space<vmem>>, vector<1x6x32xf32>
    %4 = vector.shape_cast %3 : vector<1x6x32xf32> to vector<6x32xf32>
    %5 = vector.extract_strided_slice %4 {offsets = [0, 0], sizes = [1, 32], strides = [1, 1]} : vector<6x32xf32> to vector<1x32xf32>
    %6 = vector.extract_strided_slice %4 {offsets = [1, 0], sizes = [1, 32], strides = [1, 1]} : vector<6x32xf32> to vector<1x32xf32>
    %7 = vector.extract_strided_slice %4 {offsets = [2, 0], sizes = [1, 32], strides = [1, 1]} : vector<6x32xf32> to vector<1x32xf32>
    %8 = vector.extract_strided_slice %4 {offsets = [3, 0], sizes = [1, 32], strides = [1, 1]} : vector<6x32xf32> to vector<1x32xf32>
    %9 = vector.extract_strided_slice %4 {offsets = [4, 0], sizes = [1, 32], strides = [1, 1]} : vector<6x32xf32> to vector<1x32xf32>
    %10 = vector.extract_strided_slice %4 {offsets = [5, 0], sizes = [1, 32], strides = [1, 1]} : vector<6x32xf32> to vector<1x32xf32>
    %c0_3 = arith.constant 0 : index
    %c0_4 = arith.constant 0 : index
    %11 = vector.load %arg15[%c0_3, %c0_4] : memref<8x32xf32, #tpu.memory_space<vmem>>, vector<8x32xf32>
    %12 = arith.truncf %11 : vector<8x32xf32> to vector<8x32xbf16>
    %c0_5 = arith.constant 0 : index
    %c0_6 = arith.constant 0 : index
    %c0_7 = arith.constant 0 : index
    %13 = vector.load %arg7[%c0_5, %c0_6, %c0_7] : memref<1x32x32xbf16, #tpu.memory_space<vmem>>, vector<1x32x32xbf16>
    %14 = vector.shape_cast %13 : vector<1x32x32xbf16> to vector<32x32xbf16>
    %cst = arith.constant dense<0.000000e+00> : vector<8x32xf32>
    %15 = tpu.matmul %12, %14, %cst {dimension_numbers = #tpu.dot_dimension_numbers<[1], [0], [0], [1], [0, 0, 1, 1], [], []>} : vector<8x32xbf16>, vector<32x32xbf16>, vector<8x32xf32> -> vector<8x32xf32>
    %16 = vector.broadcast %5 : vector<1x32xf32> to vector<8x32xf32>
    %17 = arith.addf %15, %16 : vector<8x32xf32>
    %18 = arith.addf %11, %17 : vector<8x32xf32>
    %cst_8 = arith.constant dense<0.000000e+00> : vector<8xf32>
    %19 = vector.multi_reduction <add>, %18, %cst_8 [1] : vector<8x32xf32> to vector<8xf32>
    %20 = vector.shape_cast %19 : vector<8xf32> to vector<8x1xf32>
    %cst_9 = arith.constant 3.200000e+01 : f32
    %21 = vector.broadcast %cst_9 : f32 to vector<8x1xf32>
    %22 = arith.divf %20, %21 : vector<8x1xf32>
    %23 = vector.broadcast %22 : vector<8x1xf32> to vector<8x32xf32>
    %24 = arith.subf %18, %23 : vector<8x32xf32>
    %25 = arith.mulf %24, %24 : vector<8x32xf32>
    %cst_10 = arith.constant dense<0.000000e+00> : vector<8xf32>
    %26 = vector.multi_reduction <add>, %25, %cst_10 [1] : vector<8x32xf32> to vector<8xf32>
    %27 = vector.shape_cast %26 : vector<8xf32> to vector<8x1xf32>
    %cst_11 = arith.constant 3.200000e+01 : f32
    %28 = vector.broadcast %cst_11 : f32 to vector<8x1xf32>
    %29 = arith.divf %27, %28 : vector<8x1xf32>
    %30 = vector.broadcast %22 : vector<8x1xf32> to vector<8x32xf32>
    %31 = arith.subf %18, %30 : vector<8x32xf32>
    %cst_12 = arith.constant 9.99999974E-6 : f32
    %32 = vector.broadcast %cst_12 : f32 to vector<8x1xf32>
    %33 = arith.addf %29, %32 : vector<8x1xf32>
    %34 = math.rsqrt %33 : vector<8x1xf32>
    %35 = vector.broadcast %34 : vector<8x1xf32> to vector<8x32xf32>
    %36 = arith.mulf %31, %35 : vector<8x32xf32>
    %37 = vector.broadcast %7 : vector<1x32xf32> to vector<8x32xf32>
    %38 = arith.mulf %36, %37 : vector<8x32xf32>
    %39 = vector.broadcast %8 : vector<1x32xf32> to vector<8x32xf32>
    %40 = arith.addf %38, %39 : vector<8x32xf32>
    %41 = arith.truncf %40 : vector<8x32xf32> to vector<8x32xbf16>
    %c0_13 = arith.constant 0 : index
    %c0_14 = arith.constant 0 : index
    %c0_15 = arith.constant 0 : index
    %42 = vector.load %arg8[%c0_13, %c0_14, %c0_15] : memref<1x32x64xbf16, #tpu.memory_space<vmem>>, vector<1x32x64xbf16>
    %43 = vector.shape_cast %42 : vector<1x32x64xbf16> to vector<32x64xbf16>
    %cst_16 = arith.constant dense<0.000000e+00> : vector<8x64xf32>
    %44 = tpu.matmul %41, %43, %cst_16 {dimension_numbers = #tpu.dot_dimension_numbers<[1], [0], [0], [1], [0, 0, 1, 1], [], []>} : vector<8x32xbf16>, vector<32x64xbf16>, vector<8x64xf32> -> vector<8x64xf32>
    %c0_17 = arith.constant 0 : index
    %c0_18 = arith.constant 0 : index
    %c0_19 = arith.constant 0 : index
    %45 = vector.load %arg11[%c0_17, %c0_18, %c0_19] : memref<1x1x64xf32, #tpu.memory_space<vmem>>, vector<1x1x64xf32>
    %46 = vector.shape_cast %45 : vector<1x1x64xf32> to vector<1x64xf32>
    %47 = vector.broadcast %46 : vector<1x64xf32> to vector<8x64xf32>
    %48 = arith.addf %44, %47 : vector<8x64xf32>
    %cst_20 = arith.constant 0.000000e+00 : f32
    %49 = vector.broadcast %cst_20 : f32 to vector<8x64xf32>
    %50 = arith.maximumf %48, %49 : vector<8x64xf32>
    %51 = arith.truncf %50 : vector<8x64xf32> to vector<8x64xbf16>
    %c0_21 = arith.constant 0 : index
    %c0_22 = arith.constant 0 : index
    %c0_23 = arith.constant 0 : index
    %52 = vector.load %arg9[%c0_21, %c0_22, %c0_23] : memref<1x64x32xbf16, #tpu.memory_space<vmem>>, vector<1x64x32xbf16>
    %53 = vector.shape_cast %52 : vector<1x64x32xbf16> to vector<64x32xbf16>
    %cst_24 = arith.constant dense<0.000000e+00> : vector<8x32xf32>
    %54 = tpu.matmul %51, %53, %cst_24 {dimension_numbers = #tpu.dot_dimension_numbers<[1], [0], [0], [1], [0, 0, 1, 1], [], []>} : vector<8x64xbf16>, vector<64x32xbf16>, vector<8x32xf32> -> vector<8x32xf32>
    %55 = vector.broadcast %6 : vector<1x32xf32> to vector<8x32xf32>
    %56 = arith.addf %54, %55 : vector<8x32xf32>
    %57 = arith.addf %40, %56 : vector<8x32xf32>
    %cst_25 = arith.constant dense<0.000000e+00> : vector<8xf32>
    %58 = vector.multi_reduction <add>, %57, %cst_25 [1] : vector<8x32xf32> to vector<8xf32>
    %59 = vector.shape_cast %58 : vector<8xf32> to vector<8x1xf32>
    %cst_26 = arith.constant 3.200000e+01 : f32
    %60 = vector.broadcast %cst_26 : f32 to vector<8x1xf32>
    %61 = arith.divf %59, %60 : vector<8x1xf32>
    %62 = vector.broadcast %61 : vector<8x1xf32> to vector<8x32xf32>
    %63 = arith.subf %57, %62 : vector<8x32xf32>
    %64 = arith.mulf %63, %63 : vector<8x32xf32>
    %cst_27 = arith.constant dense<0.000000e+00> : vector<8xf32>
    %65 = vector.multi_reduction <add>, %64, %cst_27 [1] : vector<8x32xf32> to vector<8xf32>
    %66 = vector.shape_cast %65 : vector<8xf32> to vector<8x1xf32>
    %cst_28 = arith.constant 3.200000e+01 : f32
    %67 = vector.broadcast %cst_28 : f32 to vector<8x1xf32>
    %68 = arith.divf %66, %67 : vector<8x1xf32>
    %69 = vector.broadcast %61 : vector<8x1xf32> to vector<8x32xf32>
    %70 = arith.subf %57, %69 : vector<8x32xf32>
    %cst_29 = arith.constant 9.99999974E-6 : f32
    %71 = vector.broadcast %cst_29 : f32 to vector<8x1xf32>
    %72 = arith.addf %68, %71 : vector<8x1xf32>
    %73 = math.rsqrt %72 : vector<8x1xf32>
    %74 = vector.broadcast %73 : vector<8x1xf32> to vector<8x32xf32>
    %75 = arith.mulf %70, %74 : vector<8x32xf32>
    %76 = vector.broadcast %9 : vector<1x32xf32> to vector<8x32xf32>
    %77 = arith.mulf %75, %76 : vector<8x32xf32>
    %78 = vector.broadcast %10 : vector<1x32xf32> to vector<8x32xf32>
    %79 = arith.addf %77, %78 : vector<8x32xf32>
    %c0_30 = arith.constant 0 : index
    %c0_31 = arith.constant 0 : index
    %80 = vector.load %arg15[%c0_30, %c0_31] : memref<8x32xf32, #tpu.memory_space<vmem>>, vector<8x32xf32>
    tpu.vector_store %arg15[%c0_30, %c0_31], %79 {strides = array<i32>} : memref<8x32xf32, #tpu.memory_space<vmem>>, vector<8x32xf32>,
    %c1_i32 = arith.constant 1 : i32
    %81 = arith.cmpi eq, %arg1, %c1_i32 : i32
    %82 = arith.extui %81 : i1 to i32
    %c0_i32_32 = arith.constant 0 : i32
    %83 = arith.cmpi ne, %82, %c0_i32_32 : i32
    scf.if %83 {
      %84 = arith.truncf %79 : vector<8x32xf32> to vector<8x32xbf16>
      %c0_33 = arith.constant 0 : index
      %c0_34 = arith.constant 0 : index
      %85 = vector.load %arg12[%c0_33, %c0_34] : memref<32x128xbf16, #tpu.memory_space<vmem>>, vector<32x128xbf16>
      %cst_35 = arith.constant dense<0.000000e+00> : vector<8x128xf32>
      %86 = tpu.matmul %84, %85, %cst_35 {dimension_numbers = #tpu.dot_dimension_numbers<[1], [0], [0], [1], [0, 0, 1, 1], [], []>} : vector<8x32xbf16>, vector<32x128xbf16>, vector<8x128xf32> -> vector<8x128xf32>
      %c0_36 = arith.constant 0 : index
      %c0_37 = arith.constant 0 : index
      %87 = vector.load %arg13[%c0_36, %c0_37] : memref<1x128xf32, #tpu.memory_space<vmem>>, vector<1x128xf32>
      %88 = vector.broadcast %87 : vector<1x128xf32> to vector<8x128xf32>
      %89 = arith.addf %86, %88 : vector<8x128xf32>
      %c0_38 = arith.constant 0 : index
      %c0_39 = arith.constant 0 : index
      %90 = vector.load %arg14[%c0_38, %c0_39] : memref<8x128xf32, #tpu.memory_space<vmem>>, vector<8x128xf32>
      tpu.vector_store %arg14[%c0_38, %c0_39], %89 {strides = array<i32>} : memref<8x128xf32, #tpu.memory_space<vmem>>, vector<8x128xf32>,
    } else {
    }
    return
  }
  func.func @transform_0(%arg0: i32, %arg1: i32) -> (i32, i32) {
    %c0_i32 = arith.constant 0 : i32
    %c0_i32_0 = arith.constant 0 : i32
    return %arg0, %c0_i32 : i32, i32
  }
  func.func @transform_1(%arg0: i32, %arg1: i32) -> (i32, i32) {
    %c0_i32 = arith.constant 0 : i32
    %c0_i32_0 = arith.constant 0 : i32
    return %arg0, %c0_i32 : i32, i32
  }
  func.func @transform_2(%arg0: i32, %arg1: i32) -> (i32, i32) {
    %c0_i32 = arith.constant 0 : i32
    %c0_i32_0 = arith.constant 0 : i32
    return %arg0, %c0_i32 : i32, i32
  }
  func.func @transform_3(%arg0: i32, %arg1: i32) -> (i32, i32) {
    %c0_i32 = arith.constant 0 : i32
    %c0_i32_0 = arith.constant 0 : i32
    %c0_i32_1 = arith.constant 0 : i32
    return %c0_i32, %c0_i32_0 : i32, i32
  }
  func.func @transform_4(%arg0: i32, %arg1: i32) -> (i32, i32) {
    %c0_i32 = arith.constant 0 : i32
    %c0_i32_0 = arith.constant 0 : i32
    %c0_i32_1 = arith.constant 0 : i32
    return %c0_i32, %c0_i32_0 : i32, i32
  }
  func.func @transform_5(%arg0: i32, %arg1: i32) -> (i32, i32, i32) {
    %c0_i32 = arith.constant 0 : i32
    %c0_i32_0 = arith.constant 0 : i32
    %c0_i32_1 = arith.constant 0 : i32
    return %arg1, %c0_i32, %c0_i32_0 : i32, i32, i32
  }
  func.func @transform_6(%arg0: i32, %arg1: i32) -> (i32, i32, i32) {
    %c0_i32 = arith.constant 0 : i32
    %c0_i32_0 = arith.constant 0 : i32
    %c0_i32_1 = arith.constant 0 : i32
    return %arg1, %c0_i32, %c0_i32_0 : i32, i32, i32
  }
  func.func @transform_7(%arg0: i32, %arg1: i32) -> (i32, i32, i32) {
    %c0_i32 = arith.constant 0 : i32
    %c0_i32_0 = arith.constant 0 : i32
    %c0_i32_1 = arith.constant 0 : i32
    return %arg1, %c0_i32, %c0_i32_0 : i32, i32, i32
  }
  func.func @transform_8(%arg0: i32, %arg1: i32) -> (i32, i32, i32) {
    %c0_i32 = arith.constant 0 : i32
    %c0_i32_0 = arith.constant 0 : i32
    %c0_i32_1 = arith.constant 0 : i32
    return %arg1, %c0_i32, %c0_i32_0 : i32, i32, i32
  }
  func.func @transform_9(%arg0: i32, %arg1: i32) -> (i32, i32, i32) {
    %c0_i32 = arith.constant 0 : i32
    %c0_i32_0 = arith.constant 0 : i32
    %c0_i32_1 = arith.constant 0 : i32
    return %arg1, %c0_i32, %c0_i32_0 : i32, i32, i32
  }
  func.func @transform_10(%arg0: i32, %arg1: i32) -> (i32, i32) {
    %c0_i32 = arith.constant 0 : i32
    %c0_i32_0 = arith.constant 0 : i32
    %c0_i32_1 = arith.constant 0 : i32
    return %c0_i32, %c0_i32_0 : i32, i32
  }
  func.func @transform_11(%arg0: i32, %arg1: i32) -> (i32, i32) {
    %c0_i32 = arith.constant 0 : i32
    %c0_i32_0 = arith.constant 0 : i32
    %c0_i32_1 = arith.constant 0 : i32
    return %c0_i32, %c0_i32_0 : i32, i32
  }
  func.func @transform_12(%arg0: i32, %arg1: i32) -> (i32, i32) {
    %c0_i32 = arith.constant 0 : i32
    %c0_i32_0 = arith.constant 0 : i32
    return %arg0, %c0_i32 : i32, i32
  }
}

</mosaic_0001>

<llo_original>
// kernel: transformer_forward.1
$region0: #{transformer_forward.1}
  #allocation0 [shape = 'u32[]', space=smem, size = 0x4, offset = 0x4, fixed_abs, tag = 'smem constant byte address 0x4 - core index']
  #allocation1 [shape = 'u32[144,128]{1,0:T(1,128)}', space=vmem, size = 0x12000, scoped, tag = 'internal scratch']
  #allocation2 [shape = 'f32[8,32]{1,0:T(8,128)}', space=vmem, size = 0x1000, scoped, tag = 'scratch operand']
  %s0 = inlined_call_operand.vmem [shape: f32[16,16], index: 0, kind: input, shape index: {}]
  %s1 = inlined_call_operand.vmem [shape: f32[16,1], index: 1, kind: input, shape index: {}]
  %s2 = inlined_call_operand.vmem [shape: f32[16,32], index: 2, kind: input, shape index: {}]
  %s3 = inlined_call_operand.vmem [shape: bf16[16,32], index: 3, kind: input, shape index: {}]
  %s4 = inlined_call_operand.vmem [shape: f32[1,32], index: 4, kind: input, shape index: {}]
  %s5 = inlined_call_operand.vmem [shape: bf16[2,32,32], index: 5, kind: input, shape index: {}]
  %s6 = inlined_call_operand.vmem [shape: bf16[2,32,64], index: 6, kind: input, shape index: {}]
  %s7 = inlined_call_operand.vmem [shape: bf16[2,64,32], index: 7, kind: input, shape index: {}]
  %s8 = inlined_call_operand.vmem [shape: f32[2,6,32], index: 8, kind: input, shape index: {}]
  %s9 = inlined_call_operand.vmem [shape: f32[2,1,64], index: 9, kind: input, shape index: {}]
  %s10 = inlined_call_operand.vmem [shape: bf16[32,128], index: 10, kind: input, shape index: {}]
  %s11 = inlined_call_operand.vmem [shape: f32[1,128], index: 11, kind: input, shape index: {}]
  %s12 = inlined_call_operand.vmem [shape: f32[16,128], index: 12, kind: output, shape index: {}]
  %s13 = sld [smem:[#allocation0]]
  $region89: #{transformer_forward.1} parent=0
    _
  %s15 = ssub.s32 1, %s13
  %s16 = scalar_select 0, %s15, %s13
  loop: start=0, step=1, limit=6
  $region2: #{transformer_forward.1} parent=0 // loop_pre_header
    _
  $region3: #{transformer_forward.1} parent=0 // loop_header
    %s18 = sphi 0, %s22
    %p19 = scmp.ge.s32.totalorder %s18, 6
    %s25 = sphi 0, %s37
    %s26 = sphi 0, %s33
    %s27 = sphi 0, %s25
    %s28 = sphi 0, %s26
    %s29 = sphi 0, %s27
    %s30 = sphi 0, %s28
    %s40 = sphi 0, %s42
    %s43 = sphi 0, %s40
    %s44 = sphi 0, %s43
    %s60 = sphi 0, %s44
    %s66 = sphi 0, %s68
    %s69 = sphi 0, %s66
    %s70 = sphi 0, %s69
    %s86 = sphi 0, %s70
    %s92 = sphi 0, %s94
    %s95 = sphi 0, %s92
    %s96 = sphi 0, %s95
    %s112 = sphi 0, %s96
    %s116 = sphi 0, %s116
    %s118 = sphi 0, %s116
    %s119 = sphi 0, %s118
    %s133 = sphi 0, %s119
    %s137 = sphi 0, %s137
    %s139 = sphi 0, %s137
    %s140 = sphi 0, %s139
    %s154 = sphi 0, %s140
    %s160 = sphi 0, %s162
    %s163 = sphi 0, %s160
    %s164 = sphi 0, %s163
    %s180 = sphi 0, %s164
    %s186 = sphi 0, %s188
    %s189 = sphi 0, %s186
    %s190 = sphi 0, %s189
    %s206 = sphi 0, %s190
    %s212 = sphi 0, %s214
    %s215 = sphi 0, %s212
    %s216 = sphi 0, %s215
    %s232 = sphi 0, %s216
    %s238 = sphi 0, %s240
    %s241 = sphi 0, %s238
    %s242 = sphi 0, %s241
    %s258 = sphi 0, %s242
    %s264 = sphi 0, %s266
    %s267 = sphi 0, %s264
    %s268 = sphi 0, %s267
    %s284 = sphi 0, %s268
    %s288 = sphi 0, %s288
    %s290 = sphi 0, %s288
    %s291 = sphi 0, %s290
    %s305 = sphi 0, %s291
    %s309 = sphi 0, %s309
    %s311 = sphi 0, %s309
    %s312 = sphi 0, %s311
    %s326 = sphi 0, %s312
    %s332 = sphi 0, %s334
    %s335 = sphi 0, %s332
    %s336 = sphi 0, %s335
    %s352 = sphi 0, %s336
  $region4: #{transformer_forward.1} parent=0 // loop_header_branch
    %21 = sbr.rel (%p19) target = $region8
  $region5: #{transformer_forward.1} parent=0 // loop_body
    %s23 = ssub.s32 %s18, 1
    %s24 = ssub.s32 %s18, 2
    %s31 = sadd.s32 1, %s26
    %p32 = scmp.ge.s32.totalorder %s31, 2
    %s33 = scalar_select %p32, 0, %s31
    %s34 = sadd.s32 1, %s25
    %s35 = scalar_select %p32, %s34, %s25
    %p36 = scmp.ge.s32.totalorder %s35, 2
    %s37 = scalar_select %p36, 0, %s35
    %s38 = ssub.s32 %s25, %s37
    %p39 = scmp.eq.s32.totalorder %s38, 0
    %s41 = sadd.s32 %s40, 1
    %s42 = scalar_select %p39, %s40, %s41
    %p45 = pneg %p39
    %p46 = scmp.eq.s32.totalorder %s18, 3
    %p47 = por %p45, %p46
    %p48 = scmp.ne.s32.totalorder %s40, %s43
    %p49 = scmp.eq.s32.totalorder %s18, 0
    %p50 = por %p48, %p49
    %p51 = scmp.ne.s32.totalorder %s40, %s43
    %p52 = scmp.eq.s32.totalorder %s23, 3
    %p53 = por %p51, %p52
    %p54 = scmp.ne.s32.totalorder %s43, %s44
    %p55 = scmp.eq.s32.totalorder %s23, 0
    %p56 = por %p54, %p55
    %p57 = scmp.ne.s32.totalorder %s43, %s44
    %p58 = scmp.eq.s32.totalorder %s24, 3
    %p59 = por %p57, %p58
    %p61 = scmp.ne.s32.totalorder %s44, %s60
    %p62 = scmp.eq.s32.totalorder %s24, 0
    %p63 = por %p61, %p62
    %s64 = ssub.s32 %s25, %s37
    %p65 = scmp.eq.s32.totalorder %s64, 0
    %s67 = sadd.s32 %s66, 1
    %s68 = scalar_select %p65, %s66, %s67
    %p71 = pneg %p65
    %p72 = scmp.eq.s32.totalorder %s18, 3
    %p73 = por %p71, %p72
    %p74 = scmp.ne.s32.totalorder %s66, %s69
    %p75 = scmp.eq.s32.totalorder %s18, 0
    %p76 = por %p74, %p75
    %p77 = scmp.ne.s32.totalorder %s66, %s69
    %p78 = scmp.eq.s32.totalorder %s23, 3
    %p79 = por %p77, %p78
    %p80 = scmp.ne.s32.totalorder %s69, %s70
    %p81 = scmp.eq.s32.totalorder %s23, 0
    %p82 = por %p80, %p81
    %p83 = scmp.ne.s32.totalorder %s69, %s70
    %p84 = scmp.eq.s32.totalorder %s24, 3
    %p85 = por %p83, %p84
    %p87 = scmp.ne.s32.totalorder %s70, %s86
    %p88 = scmp.eq.s32.totalorder %s24, 0
    %p89 = por %p87, %p88
    %s90 = ssub.s32 %s25, %s37
    %p91 = scmp.eq.s32.totalorder %s90, 0
    %s93 = sadd.s32 %s92, 1
    %s94 = scalar_select %p91, %s92, %s93
    %p97 = pneg %p91
    %p98 = scmp.eq.s32.totalorder %s18, 3
    %p99 = por %p97, %p98
    %p100 = scmp.ne.s32.totalorder %s92, %s95
    %p101 = scmp.eq.s32.totalorder %s18, 0
    %p102 = por %p100, %p101
    %p103 = scmp.ne.s32.totalorder %s92, %s95
    %p104 = scmp.eq.s32.totalorder %s23, 3
    %p105 = por %p103, %p104
    %p106 = scmp.ne.s32.totalorder %s95, %s96
    %p107 = scmp.eq.s32.totalorder %s23, 0
    %p108 = por %p106, %p107
    %p109 = scmp.ne.s32.totalorder %s95, %s96
    %p110 = scmp.eq.s32.totalorder %s24, 3
    %p111 = por %p109, %p110
    %p113 = scmp.ne.s32.totalorder %s96, %s112
    %p114 = scmp.eq.s32.totalorder %s24, 0
    %p115 = por %p113, %p114
    %s117 = sadd.s32 %s116, 1
    %p120 = scmp.eq.s32.totalorder %s18, 3
    %p121 = scmp.ne.s32.totalorder %s116, %s118
    %p122 = scmp.eq.s32.totalorder %s18, 0
    %p123 = por %p121, %p122
    %p124 = scmp.ne.s32.totalorder %s116, %s118
    %p125 = scmp.eq.s32.totalorder %s23, 3
    %p126 = por %p124, %p125
    %p127 = scmp.ne.s32.totalorder %s118, %s119
    %p128 = scmp.eq.s32.totalorder %s23, 0
    %p129 = por %p127, %p128
    %p130 = scmp.ne.s32.totalorder %s118, %s119
    %p131 = scmp.eq.s32.totalorder %s24, 3
    %p132 = por %p130, %p131
    %p134 = scmp.ne.s32.totalorder %s119, %s133
    %p135 = scmp.eq.s32.totalorder %s24, 0
    %p136 = por %p134, %p135
    %s138 = sadd.s32 %s137, 1
    %p141 = scmp.eq.s32.totalorder %s18, 3
    %p142 = scmp.ne.s32.totalorder %s137, %s139
    %p143 = scmp.eq.s32.totalorder %s18, 0
    %p144 = por %p142, %p143
    %p145 = scmp.ne.s32.totalorder %s137, %s139
    %p146 = scmp.eq.s32.totalorder %s23, 3
    %p147 = por %p145, %p146
    %p148 = scmp.ne.s32.totalorder %s139, %s140
    %p149 = scmp.eq.s32.totalorder %s23, 0
    %p150 = por %p148, %p149
    %p151 = scmp.ne.s32.totalorder %s139, %s140
    %p152 = scmp.eq.s32.totalorder %s24, 3
    %p153 = por %p151, %p152
    %p155 = scmp.ne.s32.totalorder %s140, %s154
    %p156 = scmp.eq.s32.totalorder %s24, 0
    %p157 = por %p155, %p156
    %s158 = ssub.s32 %s26, %s33
    %p159 = scmp.eq.s32.totalorder %s158, 0
    %s161 = sadd.s32 %s160, 1
    %s162 = scalar_select %p159, %s160, %s161
    %p165 = pneg %p159
    %p166 = scmp.eq.s32.totalorder %s18, 3
    %p167 = por %p165, %p166
    %p168 = scmp.ne.s32.totalorder %s160, %s163
    %p169 = scmp.eq.s32.totalorder %s18, 0
    %p170 = por %p168, %p169
    %p171 = scmp.ne.s32.totalorder %s160, %s163
    %p172 = scmp.eq.s32.totalorder %s23, 3
    %p173 = por %p171, %p172
    %p174 = scmp.ne.s32.totalorder %s163, %s164
    %p175 = scmp.eq.s32.totalorder %s23, 0
    %p176 = por %p174, %p175
    %p177 = scmp.ne.s32.totalorder %s163, %s164
    %p178 = scmp.eq.s32.totalorder %s24, 3
    %p179 = por %p177, %p178
    %p181 = scmp.ne.s32.totalorder %s164, %s180
    %p182 = scmp.eq.s32.totalorder %s24, 0
    %p183 = por %p181, %p182
    %s184 = ssub.s32 %s26, %s33
    %p185 = scmp.eq.s32.totalorder %s184, 0
    %s187 = sadd.s32 %s186, 1
    %s188 = scalar_select %p185, %s186, %s187
    %p191 = pneg %p185
    %p192 = scmp.eq.s32.totalorder %s18, 3
    %p193 = por %p191, %p192
    %p194 = scmp.ne.s32.totalorder %s186, %s189
    %p195 = scmp.eq.s32.totalorder %s18, 0
    %p196 = por %p194, %p195
    %p197 = scmp.ne.s32.totalorder %s186, %s189
    %p198 = scmp.eq.s32.totalorder %s23, 3
    %p199 = por %p197, %p198
    %p200 = scmp.ne.s32.totalorder %s189, %s190
    %p201 = scmp.eq.s32.totalorder %s23, 0
    %p202 = por %p200, %p201
    %p203 = scmp.ne.s32.totalorder %s189, %s190
    %p204 = scmp.eq.s32.totalorder %s24, 3
    %p205 = por %p203, %p204
    %p207 = scmp.ne.s32.totalorder %s190, %s206
    %p208 = scmp.eq.s32.totalorder %s24, 0
    %p209 = por %p207, %p208
    %s210 = ssub.s32 %s26, %s33
    %p211 = scmp.eq.s32.totalorder %s210, 0
    %s213 = sadd.s32 %s212, 1
    %s214 = scalar_select %p211, %s212, %s213
    %p217 = pneg %p211
    %p218 = scmp.eq.s32.totalorder %s18, 3
    %p219 = por %p217, %p218
    %p220 = scmp.ne.s32.totalorder %s212, %s215
    %p221 = scmp.eq.s32.totalorder %s18, 0
    %p222 = por %p220, %p221
    %p223 = scmp.ne.s32.totalorder %s212, %s215
    %p224 = scmp.eq.s32.totalorder %s23, 3
    %p225 = por %p223, %p224
    %p226 = scmp.ne.s32.totalorder %s215, %s216
    %p227 = scmp.eq.s32.totalorder %s23, 0
    %p228 = por %p226, %p227
    %p229 = scmp.ne.s32.totalorder %s215, %s216
    %p230 = scmp.eq.s32.totalorder %s24, 3
    %p231 = por %p229, %p230
    %p233 = scmp.ne.s32.totalorder %s216, %s232
    %p234 = scmp.eq.s32.totalorder %s24, 0
    %p235 = por %p233, %p234
    %s236 = ssub.s32 %s26, %s33
    %p237 = scmp.eq.s32.totalorder %s236, 0
    %s239 = sadd.s32 %s238, 1
    %s240 = scalar_select %p237, %s238, %s239
    %p243 = pneg %p237
    %p244 = scmp.eq.s32.totalorder %s18, 3
    %p245 = por %p243, %p244
    %p246 = scmp.ne.s32.totalorder %s238, %s241
    %p247 = scmp.eq.s32.totalorder %s18, 0
    %p248 = por %p246, %p247
    %p249 = scmp.ne.s32.totalorder %s238, %s241
    %p250 = scmp.eq.s32.totalorder %s23, 3
    %p251 = por %p249, %p250
    %p252 = scmp.ne.s32.totalorder %s241, %s242
    %p253 = scmp.eq.s32.totalorder %s23, 0
    %p254 = por %p252, %p253
    %p255 = scmp.ne.s32.totalorder %s241, %s242
    %p256 = scmp.eq.s32.totalorder %s24, 3
    %p257 = por %p255, %p256
    %p259 = scmp.ne.s32.totalorder %s242, %s258
    %p260 = scmp.eq.s32.totalorder %s24, 0
    %p261 = por %p259, %p260
    %s262 = ssub.s32 %s26, %s33
    %p263 = scmp.eq.s32.totalorder %s262, 0
    %s265 = sadd.s32 %s264, 1
    %s266 = scalar_select %p263, %s264, %s265
    %p269 = pneg %p263
    %p270 = scmp.eq.s32.totalorder %s18, 3
    %p271 = por %p269, %p270
    %p272 = scmp.ne.s32.totalorder %s264, %s267
    %p273 = scmp.eq.s32.totalorder %s18, 0
    %p274 = por %p272, %p273
    %p275 = scmp.ne.s32.totalorder %s264, %s267
    %p276 = scmp.eq.s32.totalorder %s23, 3
    %p277 = por %p275, %p276
    %p278 = scmp.ne.s32.totalorder %s267, %s268
    %p279 = scmp.eq.s32.totalorder %s23, 0
    %p280 = por %p278, %p279
    %p281 = scmp.ne.s32.totalorder %s267, %s268
    %p282 = scmp.eq.s32.totalorder %s24, 3
    %p283 = por %p281, %p282
    %p285 = scmp.ne.s32.totalorder %s268, %s284
    %p286 = scmp.eq.s32.totalorder %s24, 0
    %p287 = por %p285, %p286
    %s289 = sadd.s32 %s288, 1
    %p292 = scmp.eq.s32.totalorder %s18, 3
    %p293 = scmp.ne.s32.totalorder %s288, %s290
    %p294 = scmp.eq.s32.totalorder %s18, 0
    %p295 = por %p293, %p294
    %p296 = scmp.ne.s32.totalorder %s288, %s290
    %p297 = scmp.eq.s32.totalorder %s23, 3
    %p298 = por %p296, %p297
    %p299 = scmp.ne.s32.totalorder %s290, %s291
    %p300 = scmp.eq.s32.totalorder %s23, 0
    %p301 = por %p299, %p300
    %p302 = scmp.ne.s32.totalorder %s290, %s291
    %p303 = scmp.eq.s32.totalorder %s24, 3
    %p304 = por %p302, %p303
    %p306 = scmp.ne.s32.totalorder %s291, %s305
    %p307 = scmp.eq.s32.totalorder %s24, 0
    %p308 = por %p306, %p307
    %s310 = sadd.s32 %s309, 1
    %p313 = scmp.eq.s32.totalorder %s18, 3
    %p314 = scmp.ne.s32.totalorder %s309, %s311
    %p315 = scmp.eq.s32.totalorder %s18, 0
    %p316 = por %p314, %p315
    %p317 = scmp.ne.s32.totalorder %s309, %s311
    %p318 = scmp.eq.s32.totalorder %s23, 3
    %p319 = por %p317, %p318
    %p320 = scmp.ne.s32.totalorder %s311, %s312
    %p321 = scmp.eq.s32.totalorder %s23, 0
    %p322 = por %p320, %p321
    %p323 = scmp.ne.s32.totalorder %s311, %s312
    %p324 = scmp.eq.s32.totalorder %s24, 3
    %p325 = por %p323, %p324
    %p327 = scmp.ne.s32.totalorder %s312, %s326
    %p328 = scmp.eq.s32.totalorder %s24, 0
    %p329 = por %p327, %p328
    %s330 = ssub.s32 %s25, %s37
    %p331 = scmp.eq.s32.totalorder %s330, 0
    %s333 = sadd.s32 %s332, 1
    %s334 = scalar_select %p331, %s332, %s333
    %p337 = pneg %p331
    %p338 = scmp.eq.s32.totalorder %s18, 3
    %p339 = por %p337, %p338
    %p340 = scmp.ne.s32.totalorder %s332, %s335
    %p341 = scmp.eq.s32.totalorder %s18, 0
    %p342 = por %p340, %p341
    %p343 = scmp.ne.s32.totalorder %s332, %s335
    %p344 = scmp.eq.s32.totalorder %s23, 3
    %p345 = por %p343, %p344
    %p346 = scmp.ne.s32.totalorder %s335, %s336
    %p347 = scmp.eq.s32.totalorder %s23, 0
    %p348 = por %p346, %p347
    %p349 = scmp.ne.s32.totalorder %s335, %s336
    %p350 = scmp.eq.s32.totalorder %s24, 3
    %p351 = por %p349, %p350
    %p353 = scmp.ne.s32.totalorder %s336, %s352
    %p354 = scmp.eq.s32.totalorder %s24, 0
    %p355 = por %p353, %p354
    %p356 = scmp.le.s32.totalorder 1, %s18
    %p357 = scmp.lt.s32.totalorder %s18, 5
    %p358 = pnand %p356, %p357
    %p359 = pneg %p358
    // Predicated region
    $region9: #{transformer_forward.1} parent=5 // pred_check
      _
    $region10: #{transformer_forward.1} parent=5 // pred_check_branch
      %361 = sbr.rel (%p358) target = $region12
    $region11: #{transformer_forward.1} parent=5 // pred_region
      %s362 = ssub.s32 %s18, 1
      // Predicated region
      $region13: #{transformer_forward.1} parent=11 // pred_check
        %p363 = pneg %p129
      $region14: #{transformer_forward.1} parent=11 // pred_check_branch
        %365 = sbr.rel (%p363) target = $region16
      $region15: #{transformer_forward.1} parent=11 // pred_region
        _
      $region16: #{transformer_forward.1} parent=11 // pred_fallthru
        _
      // Predicated region
      $region17: #{transformer_forward.1} parent=11 // pred_check
        %p366 = pneg %p150
      $region18: #{transformer_forward.1} parent=11 // pred_check_branch
        %368 = sbr.rel (%p366) target = $region20
      $region19: #{transformer_forward.1} parent=11 // pred_region
        _
      $region20: #{transformer_forward.1} parent=11 // pred_fallthru
        _
      // Predicated region
      $region21: #{transformer_forward.1} parent=11 // pred_check
        %p369 = pneg %p301
      $region22: #{transformer_forward.1} parent=11 // pred_check_branch
        %371 = sbr.rel (%p369) target = $region24
      $region23: #{transformer_forward.1} parent=11 // pred_region
        _
      $region24: #{transformer_forward.1} parent=11 // pred_fallthru
        _
      // Predicated region
      $region25: #{transformer_forward.1} parent=11 // pred_check
        %p372 = pneg %p322
      $region26: #{transformer_forward.1} parent=11 // pred_check_branch
        %374 = sbr.rel (%p372) target = $region28
      $region27: #{transformer_forward.1} parent=11 // pred_region
        _
      $region28: #{transformer_forward.1} parent=11 // pred_fallthru
        _
    $region12: #{transformer_forward.1} parent=5 // pred_fallthru
      _
    %p375 = scmp.lt.s32.totalorder %s18, 4
    // Predicated region
    $region29: #{transformer_forward.1} parent=5 // pred_check
      %p376 = pneg %p375
    $region30: #{transformer_forward.1} parent=5 // pred_check_branch
      %378 = sbr.rel (%p376) target = $region32
    $region31: #{transformer_forward.1} parent=5 // pred_region
      // Predicated region
      $region33: #{transformer_forward.1} parent=31 // pred_check
        %p379 = pneg %p50
      $region34: #{transformer_forward.1} parent=31 // pred_check_branch
        %381 = sbr.rel (%p379) target = $region36
      $region35: #{transformer_forward.1} parent=31 // pred_region
        %p382 = scmp.lt.s32.totalorder %s25, 1
        %s383 = scalar_select %p382, %s25, 1
        %s384 = smul.addr %s383, 8
        %s385 = scalar_lea.vmem %s0, %s384
      $region36: #{transformer_forward.1} parent=31 // pred_fallthru
        _
      // Predicated region
      $region37: #{transformer_forward.1} parent=31 // pred_check
        %p386 = pneg %p76
      $region38: #{transformer_forward.1} parent=31 // pred_check_branch
        %388 = sbr.rel (%p386) target = $region40
      $region39: #{transformer_forward.1} parent=31 // pred_region
        %p389 = scmp.lt.s32.totalorder %s25, 1
        %s390 = scalar_select %p389, %s25, 1
        %s391 = smul.addr %s390, 8
        %s392 = scalar_lea.vmem %s1, %s391
      $region40: #{transformer_forward.1} parent=31 // pred_fallthru
        _
      // Predicated region
      $region41: #{transformer_forward.1} parent=31 // pred_check
        %p393 = pneg %p102
      $region42: #{transformer_forward.1} parent=31 // pred_check_branch
        %395 = sbr.rel (%p393) target = $region44
      $region43: #{transformer_forward.1} parent=31 // pred_region
        %p396 = scmp.lt.s32.totalorder %s25, 1
        %s397 = scalar_select %p396, %s25, 1
        %s398 = smul.addr %s397, 8
        %s399 = scalar_lea.vmem %s2, %s398
      $region44: #{transformer_forward.1} parent=31 // pred_fallthru
        _
      // Predicated region
      $region45: #{transformer_forward.1} parent=31 // pred_check
        %p400 = pneg %p170
      $region46: #{transformer_forward.1} parent=31 // pred_check_branch
        %402 = sbr.rel (%p400) target = $region48
      $region47: #{transformer_forward.1} parent=31 // pred_region
        %p403 = scmp.lt.s32.totalorder %s26, 1
        %s404 = scalar_select %p403, %s26, 1
        %s405 = smul.addr %s404, 4
        %s406 = smul.addr %s405, 4
        %s407 = scalar_lea.vmem %s5, %s406
      $region48: #{transformer_forward.1} parent=31 // pred_fallthru
        _
      // Predicated region
      $region49: #{transformer_forward.1} parent=31 // pred_check
        %p408 = pneg %p196
      $region50: #{transformer_forward.1} parent=31 // pred_check_branch
        %410 = sbr.rel (%p408) target = $region52
      $region51: #{transformer_forward.1} parent=31 // pred_region
        %p411 = scmp.lt.s32.totalorder %s26, 1
        %s412 = scalar_select %p411, %s26, 1
        %s413 = smul.addr %s412, 4
        %s414 = smul.addr %s413, 4
        %s415 = scalar_lea.vmem %s6, %s414
      $region52: #{transformer_forward.1} parent=31 // pred_fallthru
        _
      // Predicated region
      $region53: #{transformer_forward.1} parent=31 // pred_check
        %p416 = pneg %p222
      $region54: #{transformer_forward.1} parent=31 // pred_check_branch
        %418 = sbr.rel (%p416) target = $region56
      $region55: #{transformer_forward.1} parent=31 // pred_region
        %p419 = scmp.lt.s32.totalorder %s26, 1
        %s420 = scalar_select %p419, %s26, 1
        %s421 = smul.addr %s420, 8
        %s422 = smul.addr %s421, 4
        %s423 = scalar_lea.vmem %s7, %s422
      $region56: #{transformer_forward.1} parent=31 // pred_fallthru
        _
      // Predicated region
      $region57: #{transformer_forward.1} parent=31 // pred_check
        %p424 = pneg %p248
      $region58: #{transformer_forward.1} parent=31 // pred_check_branch
        %426 = sbr.rel (%p424) target = $region60
      $region59: #{transformer_forward.1} parent=31 // pred_region
        %p427 = scmp.lt.s32.totalorder %s26, 1
        %s428 = scalar_select %p427, %s26, 1
        %s429 = smul.addr %s428, 8
        %s430 = scalar_lea.vmem %s8, %s429
      $region60: #{transformer_forward.1} parent=31 // pred_fallthru
        _
      // Predicated region
      $region61: #{transformer_forward.1} parent=31 // pred_check
        %p431 = pneg %p274
      $region62: #{transformer_forward.1} parent=31 // pred_check_branch
        %433 = sbr.rel (%p431) target = $region64
      $region63: #{transformer_forward.1} parent=31 // pred_region
        %p434 = scmp.lt.s32.totalorder %s26, 1
        %s435 = scalar_select %p434, %s26, 1
        %s436 = scalar_lea.vmem %s9, %s435
      $region64: #{transformer_forward.1} parent=31 // pred_fallthru
        _
    $region32: #{transformer_forward.1} parent=5 // pred_fallthru
      _
    %p437 = scmp.le.s32.totalorder 1, %s18
    %p438 = scmp.lt.s32.totalorder %s18, 5
    %p439 = pnand %p437, %p438
    %p440 = pneg %p439
    // Predicated region
    $region65: #{transformer_forward.1} parent=5 // pred_check
      _
    $region66: #{transformer_forward.1} parent=5 // pred_check_branch
      %442 = sbr.rel (%p439) target = $region68
    $region67: #{transformer_forward.1} parent=5 // pred_region
      %s443 = ssub.s32 %s18, 1
      %p444 = scmp.lt.s32.totalorder %s27, 1
      %s445 = scalar_select %p444, %s27, 1
      %s446 = smul.addr %s445, 8
      %s447 = scalar_lea.vmem %s0, %s446
      %p448 = pneg %p56
      %p449 = pneg %p53
      %p450 = scmp.lt.s32.totalorder %s27, 1
      %s451 = scalar_select %p450, %s27, 1
      %s452 = smul.addr %s451, 8
      %s453 = scalar_lea.vmem %s1, %s452
      %p454 = pneg %p82
      %p455 = pneg %p79
      %p456 = scmp.lt.s32.totalorder %s27, 1
      %s457 = scalar_select %p456, %s27, 1
      %s458 = smul.addr %s457, 8
      %s459 = scalar_lea.vmem %s2, %s458
      %p460 = pneg %p108
      %p461 = pneg %p105
      %p462 = pneg %p129
      %p463 = pneg %p126
      %p464 = pneg %p150
      %p465 = pneg %p147
      %p466 = scmp.lt.s32.totalorder %s28, 1
      %s467 = scalar_select %p466, %s28, 1
      %s468 = smul.addr %s467, 4
      %s469 = smul.addr %s468, 4
      %s470 = scalar_lea.vmem %s5, %s469
      %p471 = pneg %p176
      %p472 = pneg %p173
      %p473 = scmp.lt.s32.totalorder %s28, 1
      %s474 = scalar_select %p473, %s28, 1
      %s475 = smul.addr %s474, 4
      %s476 = smul.addr %s475, 4
      %s477 = scalar_lea.vmem %s6, %s476
      %p478 = pneg %p202
      %p479 = pneg %p199
      %p480 = scmp.lt.s32.totalorder %s28, 1
      %s481 = scalar_select %p480, %s28, 1
      %s482 = smul.addr %s481, 8
      %s483 = smul.addr %s482, 4
      %s484 = scalar_lea.vmem %s7, %s483
      %p485 = pneg %p228
      %p486 = pneg %p225
      %p487 = scmp.lt.s32.totalorder %s28, 1
      %s488 = scalar_select %p487, %s28, 1
      %s489 = smul.addr %s488, 8
      %s490 = scalar_lea.vmem %s8, %s489
      %p491 = pneg %p254
      %p492 = pneg %p251
      %p493 = scmp.lt.s32.totalorder %s28, 1
      %s494 = scalar_select %p493, %s28, 1
      %s495 = scalar_lea.vmem %s9, %s494
      %p496 = pneg %p280
      %p497 = pneg %p277
      %p498 = pneg %p301
      %p499 = pneg %p298
      %p500 = pneg %p322
      %p501 = pneg %p319
      %p502 = pneg %p348
      %p503 = pneg %p345
      %p504 = scmp.lt.s32.totalorder %s27, 1
      %s505 = scalar_select %p504, %s27, 1
      %s506 = smul.addr %s505, 8
      %s507 = scalar_lea.vmem %s12, %s506
      %p508 = scmp.lt.s32.totalorder %s27, 1
      %s509 = scalar_select %p508, %s27, 1
      %s510 = smul.addr %s509, 8
      %s511 = scalar_lea.vmem %s0, %s510
      %p512 = scmp.lt.s32.totalorder %s27, 1
      %s513 = scalar_select %p512, %s27, 1
      %s514 = smul.addr %s513, 8
      %s515 = scalar_lea.vmem %s1, %s514
      %p516 = scmp.lt.s32.totalorder %s27, 1
      %s517 = scalar_select %p516, %s27, 1
      %s518 = smul.addr %s517, 8
      %s519 = scalar_lea.vmem %s2, %s518
      %p520 = scmp.lt.s32.totalorder %s28, 1
      %s521 = scalar_select %p520, %s28, 1
      %s522 = smul.addr %s521, 4
      %s523 = smul.addr %s522, 4
      %s524 = scalar_lea.vmem %s5, %s523
      %p525 = scmp.lt.s32.totalorder %s28, 1
      %s526 = scalar_select %p525, %s28, 1
      %s527 = smul.addr %s526, 4
      %s528 = smul.addr %s527, 4
      %s529 = scalar_lea.vmem %s6, %s528
      %p530 = scmp.lt.s32.totalorder %s28, 1
      %s531 = scalar_select %p530, %s28, 1
      %s532 = smul.addr %s531, 8
      %s533 = smul.addr %s532, 4
      %s534 = scalar_lea.vmem %s7, %s533
      %p535 = scmp.lt.s32.totalorder %s28, 1
      %s536 = scalar_select %p535, %s28, 1
      %s537 = smul.addr %s536, 8
      %s538 = scalar_lea.vmem %s8, %s537
      %p539 = scmp.lt.s32.totalorder %s28, 1
      %s540 = scalar_select %p539, %s28, 1
      %s541 = scalar_lea.vmem %s9, %s540
      %p542 = scmp.lt.s32.totalorder %s27, 1
      %s543 = scalar_select %p542, %s27, 1
      %s544 = smul.addr %s543, 8
      %s545 = scalar_lea.vmem %s12, %s544
      %p547 = scmp.eq.s32.totalorder %s28, 0
      // Predicated region
      $region69: #{transformer_forward.1} parent=67 // pred_check
        %p548 = pneg %p547
      $region70: #{transformer_forward.1} parent=67 // pred_check_branch
        %550 = sbr.rel (%p548) target = $region72
      $region71: #{transformer_forward.1} parent=67 // pred_region
        %v551 = vld [vmem:[%s511] sm:$0xff]
        %v552 = vpack.c.bf16 %v551, %v551
        %v553 = vld [vmem:[%s3] sm:$0xf]
        %v554 = vld [vmem:[%s3 + $0x4] sm:$0xf]
        %v555 = vld [vmem:[%s515] sm:$0xff]
        %v556 = vld [vmem:[%s4] sm:$0x1]
        %558 = vset.pattern.permute.xlu0 0
        %559 = vperm.xlu0 %558, %v555
        %v560 = vpop.permute.xlu0 %559
        %v563 = vlaneseq
        %v564 = vshrl.u32 %v563, 7
        %v565 = vsub.s32 0, %v564
        %v566 = vrot.slane %v556, %v565
        %v568 = vmul.f32 %v560, %v566
        %v571 = vunpack.c.l.b16 %v553
        %v572 = vunpack.c.l.b16 %v554
        %v573 = vpack.c.b16 %v572, %v571
        %vm575 = vcmask 130048
        %v577 = vsel %vm575, %v552, 0
        %579 = vmatprep.subr.bf16.mxu0 0
        %580 = vmatpush1.bf16.msra.mxu0 0
        %581 = vmatprep.subr.bf16.mxu0 0
        %582 = vmatpush1.bf16.msra.mxu0 0
        %583 = vmatprep.subr.bf16.mxu0 0
        %584 = vmatpush1.bf16.msra.mxu0 0
        %585 = vmatprep.subr.bf16.mxu0 0
        %586 = vmatpush1.bf16.msra.mxu0 0
        %587 = vmatprep.subr.bf16.mxu0 0
        %588 = vmatpush1.bf16.msra.mxu0 0
        %589 = vmatprep.subr.bf16.mxu0 0
        %590 = vmatpush1.bf16.msra.mxu0 0
        %591 = vmatprep.subr.bf16.mxu0 0
        %592 = vmatpush1.bf16.msra.mxu0 0
        %593 = vmatprep.subr.bf16.mxu0 0
        %594 = vmatpush1.bf16.msra.mxu0 %v573
        %595 = vmatprep.subr.bf16.mxu0 0
        %596 = vmatpush2.bf16.msra.mxu0 0
        %597 = vmatprep.subr.bf16.mxu0 0
        %598 = vmatpush2.bf16.msra.mxu0 0
        %599 = vmatprep.subr.bf16.mxu0 0
        %600 = vmatpush2.bf16.msra.mxu0 0
        %601 = vmatprep.subr.bf16.mxu0 0
        %602 = vmatpush2.bf16.msra.mxu0 0
        %603 = vmatprep.subr.bf16.mxu0 0
        %604 = vmatpush2.bf16.msra.mxu0 0
        %605 = vmatprep.subr.bf16.mxu0 0
        %606 = vmatpush2.bf16.msra.mxu0 0
        %607 = vmatprep.subr.bf16.mxu0 0
        %608 = vmatpush2.bf16.msra.mxu0 0
        %609 = vmatprep.subr.bf16.mxu0 0
        %610 = vmatpush2.bf16.msra.mxu0 0
        %611 = vmatprep.mubr.bf16.mxu0 0
        %612 = vmatmul.mubr.bf16.gmra.mxu0 %v577
        %v613 = vpop.f32.mrf.mxu0
        %v614 = vadd.f32 %v568, %v613
        %v615 = vpop.f32.mrf.mxu0
        %v616 = vpop.f32.mrf.mxu0
        %v617 = vpop.f32.mrf.mxu0
        %618 = vdwg.mxu0
        %v619 = vld [vmem:[%s519] sm:$0xff]
        %v620 = vadd.f32 %v614, %v619
        %vm621 = vcmask 261120
        %622 = vst.msk [vmem:[#allocation2] sm:$0xff] %vm621, %v620
      $region72: #{transformer_forward.1} parent=67 // pred_fallthru
        _
      %v623 = vld [vmem:[%s538] sm:$0x3f]
      %v624 = vld [vmem:[#allocation2] sm:$0xff]
      %v625 = vpack.c.bf16 %v624, %v624
      %v626 = vld [vmem:[%s524] sm:$0xf]
      %v627 = vld [vmem:[%s524 + $0x4] sm:$0xf]
      %v628 = vld [vmem:[%s524 + $0x8] sm:$0xf]
      %v629 = vld [vmem:[%s524 + $0xc] sm:$0xf]
      %v630 = vlaneseq
      %v631 = vshrl.u32 %v630, 7
      %v632 = vsub.s32 0, %v631
      %v633 = vrot.slane %v623, %v632
      %v638 = vunpack.c.l.b16 %v626
      %v639 = vunpack.c.l.b16 %v627
      %v640 = vunpack.c.l.b16 %v628
      %v641 = vunpack.c.l.b16 %v629
      %v642 = vpack.c.b16 %v639, %v638
      %v643 = vpack.c.b16 %v641, %v640
      %vm646 = vcmask 261120
      %v648 = vsel %vm646, %v625, 0
      %650 = vmatprep.subr.bf16.mxu0 0
      %651 = vmatpush1.bf16.msra.mxu0 0
      %652 = vmatprep.subr.bf16.mxu0 0
      %653 = vmatpush1.bf16.msra.mxu0 0
      %654 = vmatprep.subr.bf16.mxu0 0
      %655 = vmatpush1.bf16.msra.mxu0 0
      %656 = vmatprep.subr.bf16.mxu0 0
      %657 = vmatpush1.bf16.msra.mxu0 0
      %658 = vmatprep.subr.bf16.mxu0 0
      %659 = vmatpush1.bf16.msra.mxu0 0
      %660 = vmatprep.subr.bf16.mxu0 0
      %661 = vmatpush1.bf16.msra.mxu0 0
      %662 = vmatprep.subr.bf16.mxu0 0
      %663 = vmatpush1.bf16.msra.mxu0 %v643
      %664 = vmatprep.subr.bf16.mxu0 0
      %665 = vmatpush1.bf16.msra.mxu0 %v642
      %666 = vmatprep.subr.bf16.mxu0 0
      %667 = vmatpush2.bf16.msra.mxu0 0
      %668 = vmatprep.subr.bf16.mxu0 0
      %669 = vmatpush2.bf16.msra.mxu0 0
      %670 = vmatprep.subr.bf16.mxu0 0
      %671 = vmatpush2.bf16.msra.mxu0 0
      %672 = vmatprep.subr.bf16.mxu0 0
      %673 = vmatpush2.bf16.msra.mxu0 0
      %674 = vmatprep.subr.bf16.mxu0 0
      %675 = vmatpush2.bf16.msra.mxu0 0
      %676 = vmatprep.subr.bf16.mxu0 0
      %677 = vmatpush2.bf16.msra.mxu0 0
      %678 = vmatprep.subr.bf16.mxu0 0
      %679 = vmatpush2.bf16.msra.mxu0 0
      %680 = vmatprep.subr.bf16.mxu0 0
      %681 = vmatpush2.bf16.msra.mxu0 0
      %682 = vmatprep.mubr.bf16.mxu0 0
      %683 = vmatmul.mubr.bf16.gmra.mxu0 %v648
      %v684 = vpop.f32.mrf.mxu0
      %v685 = vadd.f32 %v633, %v684
      %v686 = vpop.f32.mrf.mxu0
      %v687 = vpop.f32.mrf.mxu0
      %v688 = vpop.f32.mrf.mxu0
      %689 = vdwg.mxu0
      %v690 = vadd.f32 %v624, %v685
      %v691 = vsel %vm646, %v690, 0.0
      %692 = vadd.xlane.f32.xlu0 %v691
      %v693 = vpop.xlane.xlu0 %692
      %v694 = vrcp.pop 32.0
      %v695 = vmul.f32 %v693, %v694
      %v696 = vsub.f32 %v690, %v695
      %v697 = vmul.f32 %v696, %v696
      %v698 = vsel %vm646, %v697, 0.0
      %699 = vadd.xlane.f32.xlu0 %v698
      %v700 = vpop.xlane.xlu0 %699
      %v701 = vmul.f32 %v700, %v694
      %v702 = vadd.f32 %v701, 1e-05
      %v703 = vrsqrt.pop %v702
      %v704 = vmul.f32 %v696, %v703
      %v705 = vlaneseq
      %v706 = vshrl.u32 %v705, 7
      %v707 = vsub.s32 2, %v706
      %v708 = vrot.slane %v623, %v707
      %v709 = vmul.f32 %v704, %v708
      %v710 = vlaneseq
      %v711 = vshrl.u32 %v710, 7
      %v712 = vsub.s32 3, %v711
      %v713 = vrot.slane %v623, %v712
      %v714 = vadd.f32 %v709, %v713
      %v715 = vpack.c.bf16 %v714, %v714
      %v716 = vld [vmem:[%s529] sm:$0xf]
      %v717 = vld [vmem:[%s529 + $0x4] sm:$0xf]
      %v718 = vld [vmem:[%s529 + $0x8] sm:$0xf]
      %v719 = vld [vmem:[%s529 + $0xc] sm:$0xf]
      %v720 = vld [vmem:[%s541] sm:$0x1]
      %v722 = vlaneseq
      %v723 = vshrl.u32 %v722, 7
      %v724 = vsub.s32 0, %v723
      %v725 = vrot.slane %v720, %v724
      %v731 = vunpack.c.l.b16 %v716
      %v732 = vunpack.c.l.b16 %v717
      %v733 = vunpack.c.l.b16 %v718
      %v734 = vunpack.c.l.b16 %v719
      %v735 = vpack.c.b16 %v732, %v731
      %v736 = vpack.c.b16 %v734, %v733
      %v740 = vsel %vm646, %v715, 0
      %742 = vmatprep.subr.bf16.mxu0 0
      %743 = vmatpush1.bf16.msra.mxu0 0
      %744 = vmatprep.subr.bf16.mxu0 0
      %745 = vmatpush1.bf16.msra.mxu0 0
      %746 = vmatprep.subr.bf16.mxu0 0
      %747 = vmatpush1.bf16.msra.mxu0 0
      %748 = vmatprep.subr.bf16.mxu0 0
      %749 = vmatpush1.bf16.msra.mxu0 0
      %750 = vmatprep.subr.bf16.mxu0 0
      %751 = vmatpush1.bf16.msra.mxu0 0
      %752 = vmatprep.subr.bf16.mxu0 0
      %753 = vmatpush1.bf16.msra.mxu0 0
      %754 = vmatprep.subr.bf16.mxu0 0
      %755 = vmatpush1.bf16.msra.mxu0 %v736
      %756 = vmatprep.subr.bf16.mxu0 0
      %757 = vmatpush1.bf16.msra.mxu0 %v735
      %758 = vmatprep.subr.bf16.mxu0 0
      %759 = vmatpush2.bf16.msra.mxu0 0
      %760 = vmatprep.subr.bf16.mxu0 0
      %761 = vmatpush2.bf16.msra.mxu0 0
      %762 = vmatprep.subr.bf16.mxu0 0
      %763 = vmatpush2.bf16.msra.mxu0 0
      %764 = vmatprep.subr.bf16.mxu0 0
      %765 = vmatpush2.bf16.msra.mxu0 0
      %766 = vmatprep.subr.bf16.mxu0 0
      %767 = vmatpush2.bf16.msra.mxu0 0
      %768 = vmatprep.subr.bf16.mxu0 0
      %769 = vmatpush2.bf16.msra.mxu0 0
      %770 = vmatprep.subr.bf16.mxu0 0
      %771 = vmatpush2.bf16.msra.mxu0 0
      %772 = vmatprep.subr.bf16.mxu0 0
      %773 = vmatpush2.bf16.msra.mxu0 0
      %774 = vmatprep.mubr.bf16.mxu0 0
      %775 = vmatmul.mubr.bf16.gmra.mxu0 %v740
      %v776 = vpop.f32.mrf.mxu0
      %v777 = vadd.f32 %v725, %v776
      %v778 = vpop.f32.mrf.mxu0
      %v779 = vpop.f32.mrf.mxu0
      %v780 = vpop.f32.mrf.mxu0
      %781 = vdwg.mxu0
      %v782 = vmax.f32 %v777, 0.0
      %v783 = vpack.c.bf16 %v782, %v782
      %v784 = vld [vmem:[%s534] sm:$0xf]
      %v785 = vld [vmem:[%s534 + $0x4] sm:$0xf]
      %v786 = vld [vmem:[%s534 + $0x8] sm:$0xf]
      %v787 = vld [vmem:[%s534 + $0xc] sm:$0xf]
      %v788 = vld [vmem:[%s534 + $0x10] sm:$0xf]
      %v789 = vld [vmem:[%s534 + $0x14] sm:$0xf]
      %v790 = vld [vmem:[%s534 + $0x18] sm:$0xf]
      %v791 = vld [vmem:[%s534 + $0x1c] sm:$0xf]
      %v792 = vlaneseq
      %v793 = vshrl.u32 %v792, 7
      %v794 = vsub.s32 1, %v793
      %v795 = vrot.slane %v623, %v794
      %v804 = vunpack.c.l.b16 %v784
      %v805 = vunpack.c.l.b16 %v785
      %v806 = vunpack.c.l.b16 %v786
      %v807 = vunpack.c.l.b16 %v787
      %v808 = vunpack.c.l.b16 %v788
      %v809 = vunpack.c.l.b16 %v789
      %v810 = vunpack.c.l.b16 %v790
      %v811 = vunpack.c.l.b16 %v791
      %v812 = vpack.c.b16 %v805, %v804
      %v813 = vpack.c.b16 %v807, %v806
      %v814 = vpack.c.b16 %v809, %v808
      %v815 = vpack.c.b16 %v811, %v810
      %vm820 = vcmask 523264
      %v822 = vsel %vm820, %v783, 0
      %824 = vmatprep.subr.bf16.mxu0 0
      %825 = vmatpush1.bf16.msra.mxu0 0
      %826 = vmatprep.subr.bf16.mxu0 0
      %827 = vmatpush1.bf16.msra.mxu0 0
      %828 = vmatprep.subr.bf16.mxu0 0
      %829 = vmatpush1.bf16.msra.mxu0 0
      %830 = vmatprep.subr.bf16.mxu0 0
      %831 = vmatpush1.bf16.msra.mxu0 0
      %832 = vmatprep.subr.bf16.mxu0 0
      %833 = vmatpush1.bf16.msra.mxu0 %v815
      %834 = vmatprep.subr.bf16.mxu0 0
      %835 = vmatpush1.bf16.msra.mxu0 %v814
      %836 = vmatprep.subr.bf16.mxu0 0
      %837 = vmatpush1.bf16.msra.mxu0 %v813
      %838 = vmatprep.subr.bf16.mxu0 0
      %839 = vmatpush1.bf16.msra.mxu0 %v812
      %840 = vmatprep.subr.bf16.mxu0 0
      %841 = vmatpush2.bf16.msra.mxu0 0
      %842 = vmatprep.subr.bf16.mxu0 0
      %843 = vmatpush2.bf16.msra.mxu0 0
      %844 = vmatprep.subr.bf16.mxu0 0
      %845 = vmatpush2.bf16.msra.mxu0 0
      %846 = vmatprep.subr.bf16.mxu0 0
      %847 = vmatpush2.bf16.msra.mxu0 0
      %848 = vmatprep.subr.bf16.mxu0 0
      %849 = vmatpush2.bf16.msra.mxu0 0
      %850 = vmatprep.subr.bf16.mxu0 0
      %851 = vmatpush2.bf16.msra.mxu0 0
      %852 = vmatprep.subr.bf16.mxu0 0
      %853 = vmatpush2.bf16.msra.mxu0 0
      %854 = vmatprep.subr.bf16.mxu0 0
      %855 = vmatpush2.bf16.msra.mxu0 0
      %856 = vmatprep.mubr.bf16.mxu0 0
      %857 = vmatmul.mubr.bf16.gmra.mxu0 %v822
      %v858 = vpop.f32.mrf.mxu0
      %v859 = vadd.f32 %v795, %v858
      %v860 = vpop.f32.mrf.mxu0
      %v861 = vpop.f32.mrf.mxu0
      %v862 = vpop.f32.mrf.mxu0
      %863 = vdwg.mxu0
      %v864 = vadd.f32 %v714, %v859
      %v865 = vsel %vm646, %v864, 0.0
      %866 = vadd.xlane.f32.xlu0 %v865
      %v867 = vpop.xlane.xlu0 %866
      %v868 = vmul.f32 %v867, %v694
      %v869 = vsub.f32 %v864, %v868
      %v870 = vmul.f32 %v869, %v869
      %v871 = vsel %vm646, %v870, 0.0
      %872 = vadd.xlane.f32.xlu0 %v871
      %v873 = vpop.xlane.xlu0 %872
      %v874 = vmul.f32 %v873, %v694
      %v875 = vadd.f32 %v874, 1e-05
      %v876 = vrsqrt.pop %v875
      %v877 = vmul.f32 %v869, %v876
      %v878 = vlaneseq
      %v879 = vshrl.u32 %v878, 7
      %v880 = vsub.s32 4, %v879
      %v881 = vrot.slane %v623, %v880
      %v882 = vmul.f32 %v877, %v881
      %v883 = vlaneseq
      %v884 = vshrl.u32 %v883, 7
      %v885 = vsub.s32 5, %v884
      %v886 = vrot.slane %v623, %v885
      %v887 = vadd.f32 %v882, %v886
      %888 = vst.msk [vmem:[#allocation2] sm:$0xff] %vm646, %v887
      %p889 = scmp.eq.s32.totalorder %s28, 1
      // Predicated region
      $region73: #{transformer_forward.1} parent=67 // pred_check
        %p890 = pneg %p889
      $region74: #{transformer_forward.1} parent=67 // pred_check_branch
        %892 = sbr.rel (%p890) target = $region76
      $region75: #{transformer_forward.1} parent=67 // pred_region
        %v893 = vpack.c.bf16 %v887, %v887
        %v894 = vld [vmem:[%s10] sm:$0xf]
        %v895 = vld [vmem:[%s10 + $0x4] sm:$0xf]
        %v896 = vld [vmem:[%s10 + $0x8] sm:$0xf]
        %v897 = vld [vmem:[%s10 + $0xc] sm:$0xf]
        %v898 = vld [vmem:[%s11] sm:$0x1]
        %v900 = vlaneseq
        %v901 = vshrl.u32 %v900, 7
        %v902 = vsub.s32 0, %v901
        %v903 = vrot.slane %v898, %v902
        %v909 = vunpack.c.l.b16 %v894
        %v910 = vunpack.c.l.b16 %v895
        %v911 = vunpack.c.l.b16 %v896
        %v912 = vunpack.c.l.b16 %v897
        %v913 = vpack.c.b16 %v910, %v909
        %v914 = vpack.c.b16 %v912, %v911
        %v918 = vsel %vm646, %v893, 0
        %920 = vmatprep.subr.bf16.mxu0 0
        %921 = vmatpush1.bf16.msra.mxu0 0
        %922 = vmatprep.subr.bf16.mxu0 0
        %923 = vmatpush1.bf16.msra.mxu0 0
        %924 = vmatprep.subr.bf16.mxu0 0
        %925 = vmatpush1.bf16.msra.mxu0 0
        %926 = vmatprep.subr.bf16.mxu0 0
        %927 = vmatpush1.bf16.msra.mxu0 0
        %928 = vmatprep.subr.bf16.mxu0 0
        %929 = vmatpush1.bf16.msra.mxu0 0
        %930 = vmatprep.subr.bf16.mxu0 0
        %931 = vmatpush1.bf16.msra.mxu0 0
        %932 = vmatprep.subr.bf16.mxu0 0
        %933 = vmatpush1.bf16.msra.mxu0 %v914
        %934 = vmatprep.subr.bf16.mxu0 0
        %935 = vmatpush1.bf16.msra.mxu0 %v913
        %936 = vmatprep.subr.bf16.mxu0 0
        %937 = vmatpush2.bf16.msra.mxu0 0
        %938 = vmatprep.subr.bf16.mxu0 0
        %939 = vmatpush2.bf16.msra.mxu0 0
        %940 = vmatprep.subr.bf16.mxu0 0
        %941 = vmatpush2.bf16.msra.mxu0 0
        %942 = vmatprep.subr.bf16.mxu0 0
        %943 = vmatpush2.bf16.msra.mxu0 0
        %944 = vmatprep.subr.bf16.mxu0 0
        %945 = vmatpush2.bf16.msra.mxu0 0
        %946 = vmatprep.subr.bf16.mxu0 0
        %947 = vmatpush2.bf16.msra.mxu0 0
        %948 = vmatprep.subr.bf16.mxu0 0
        %949 = vmatpush2.bf16.msra.mxu0 0
        %950 = vmatprep.subr.bf16.mxu0 0
        %951 = vmatpush2.bf16.msra.mxu0 0
        %952 = vmatprep.mubr.bf16.mxu0 0
        %953 = vmatmul.mubr.bf16.gmra.mxu0 %v918
        %v954 = vpop.f32.mrf.mxu0
        %v955 = vadd.f32 %v903, %v954
        %v956 = vpop.f32.mrf.mxu0
        %v957 = vpop.f32.mrf.mxu0
        %v958 = vpop.f32.mrf.mxu0
        %959 = vdwg.mxu0
        %960 = vst [vmem:[%s545] sm:$0xff] %v955
      $region76: #{transformer_forward.1} parent=67 // pred_fallthru
        _
      %p961 = scmp.lt.s32.totalorder %s27, 1
      %s962 = scalar_select %p961, %s27, 1
      %s963 = smul.addr %s962, 8
      %s964 = scalar_lea.vmem %s12, %s963
      // Predicated region
      $region77: #{transformer_forward.1} parent=67 // pred_check
        %p965 = pneg %p345
      $region78: #{transformer_forward.1} parent=67 // pred_check_branch
        %967 = sbr.rel (%p965) target = $region80
      $region79: #{transformer_forward.1} parent=67 // pred_region
        _
      $region80: #{transformer_forward.1} parent=67 // pred_fallthru
        _
    $region68: #{transformer_forward.1} parent=5 // pred_fallthru
      _
    %p968 = scmp.le.s32.totalorder 2, %s18
    // Predicated region
    $region81: #{transformer_forward.1} parent=5 // pred_check
      %p969 = pneg %p968
    $region82: #{transformer_forward.1} parent=5 // pred_check_branch
      %971 = sbr.rel (%p969) target = $region84
    $region83: #{transformer_forward.1} parent=5 // pred_region
      %s972 = ssub.s32 %s18, 2
      // Predicated region
      $region85: #{transformer_forward.1} parent=83 // pred_check
        %p973 = pneg %p351
      $region86: #{transformer_forward.1} parent=83 // pred_check_branch
        %975 = sbr.rel (%p973) target = $region88
      $region87: #{transformer_forward.1} parent=83 // pred_region
        %p976 = scmp.lt.s32.totalorder %s29, 1
        %s977 = scalar_select %p976, %s29, 1
        %s978 = smul.addr %s977, 8
        %s979 = scalar_lea.vmem %s12, %s978
      $region88: #{transformer_forward.1} parent=83 // pred_fallthru
        _
    $region84: #{transformer_forward.1} parent=5 // pred_fallthru
      _
  $region6: #{transformer_forward.1} parent=0 // loop_footer
    %s22 = sadd.s32 1, %s18
  $region7: #{transformer_forward.1} parent=0 // loop_footer_branch
    %17 = sbr.rel target = $region3
  $region8: #{transformer_forward.1} parent=0 // loop_exit
    _

</llo_original>
